<compile_context>
chip_gen: v6e
topology: v6e:2x2x1
jax: 0.10.0
libtpu: 0.0.40
codegen_flags: <defaults>
</compile_context>

<pallas_src>
import math

import jax
import jax.numpy as jnp
from jax.experimental import pallas as pl
from jax.experimental.pallas import tpu as pltpu

_LANE = 128


def _round_up(x: int, m: int) -> int:
    return (x + m - 1) // m * m


def _sublane(dtype) -> int:
    # Packed sublane tile: 8 for 4-byte, 16 for 2-byte, 32 for 1-byte dtypes.
    return {1: 32, 2: 16, 4: 8}.get(jnp.dtype(dtype).itemsize, 8)


def _vmem_capacity_bytes() -> int:
    try:
        info = pltpu.get_tpu_info()
        cap = getattr(info, "vmem_capacity_bytes", None)
        if cap:
            return int(cap)
    except Exception:
        pass
    return 64 * 1024 * 1024  # conservative (v7x per-TensorCore)


def _tile_bytes(tm: int, dim_p: int, th: int, compute_dtype, out_dtype,
                use_scratch: bool) -> int:
    """Rough per-step VMEM footprint (double-buffered in/out tiles + accumulator)."""
    cb = jnp.dtype(compute_dtype).itemsize
    ob = jnp.dtype(out_dtype).itemsize
    buf = 2 * (tm * dim_p * cb           # x tile
               + dim_p * th * cb         # W1 hid-chunk
               + th * dim_p * cb         # W2 hid-chunk
               + 8 * th * 4              # b1 chunk (f32, sublane-padded)
               + 8 * dim_p * 4           # b2       (f32, sublane-padded)
               + tm * dim_p * ob)        # output tile
    if use_scratch:
        buf += tm * dim_p * 4            # f32 accumulator (single-buffered scratch)
    return buf


# ---------------------------------------------------------------------------
# Kernels
# ---------------------------------------------------------------------------

def _mlp_kernel_f32out(x_ref, w1_ref, b1_ref, w2_ref, b2_ref, o_ref):
    """Output dtype is f32: accumulate directly into the resident output tile."""
    j = pl.program_id(1)

    h = jnp.dot(x_ref[...], w1_ref[...], preferred_element_type=jnp.float32)
    h = jnp.maximum(h + b1_ref[...].astype(jnp.float32), 0.0)
    # do1: identity (inference-mode dropout)
    contrib = jnp.dot(h.astype(w2_ref.dtype), w2_ref[...],
                      preferred_element_type=jnp.float32)

    @pl.when(j == 0)
    def _():
        # do2: identity (inference-mode dropout)
        o_ref[...] = contrib + b2_ref[...].astype(jnp.float32)

    @pl.when(j > 0)
    def _():
        o_ref[...] += contrib


def _mlp_kernel_acc(x_ref, w1_ref, b1_ref, w2_ref, b2_ref, o_ref, acc_ref):
    """Non-f32 output dtype: accumulate in an f32 VMEM scratch, cast on the last step."""
    j = pl.program_id(1)

    @pl.when(j == 0)
    def _():
        acc_ref[...] = jnp.zeros_like(acc_ref)

    h = jnp.dot(x_ref[...], w1_ref[...], preferred_element_type=jnp.float32)
    h = jnp.maximum(h + b1_ref[...].astype(jnp.float32), 0.0)
    # do1: identity (inference-mode dropout)
    acc_ref[...] += jnp.dot(h.astype(w2_ref.dtype), w2_ref[...],
                            preferred_element_type=jnp.float32)

    @pl.when(j == pl.num_programs(1) - 1)
    def _():
        # do2: identity (inference-mode dropout)
        o_ref[...] = (acc_ref[...] + b2_ref[...].astype(jnp.float32)).astype(o_ref.dtype)


# ---------------------------------------------------------------------------
# Parameter preparation (done once; hoists padding/casting out of the forward)
# ---------------------------------------------------------------------------

def prepare_mlp_params(w1, b1, w2, b2, *, compute_dtype=jnp.bfloat16,
                       out_dtype=jnp.float32, tm=256, th_max=None):
    """Pad weights to lane multiples, cast to the matmul dtype, and pick the hid tiling.

    w1: (dim, hid), b1: (hid,), w2: (hid, dim), b2: (dim,).
    """
    dim, hid = w1.shape
    assert w2.shape == (hid, dim) and b1.shape == (hid,) and b2.shape == (dim,)

    compute_dtype = jnp.dtype(compute_dtype)
    out_dtype = jnp.dtype(out_dtype)
    use_scratch = out_dtype != jnp.dtype(jnp.float32)

    dim_p = _round_up(dim, _LANE)
    hid_p0 = _round_up(hid, _LANE)
    budget = int(_vmem_capacity_bytes() * 0.85)
    if th_max is not None:
        th_max = _round_up(int(th_max), _LANE)

    # Pick the hid chunk size: start with the whole hidden dim (weights streamed once per
    # row tile), shrink by powers of two until the double-buffered tiles fit the budget.
    n_j = 1
    while True:
        th = _round_up(-(-hid_p0 // n_j), _LANE)
        fits = _tile_bytes(tm, dim_p, th, compute_dtype, out_dtype, use_scratch) <= budget
        cap_ok = (th_max is None) or (th <= th_max)
        if (fits and cap_ok) or th <= _LANE:
            break
        n_j *= 2
    hid_p = n_j * th

    # Pad + cast once (padded rows/cols are zero and contribute nothing).
    w1_p = jnp.pad(w1, ((0, dim_p - dim), (0, hid_p - hid))).astype(compute_dtype)
    b1_p = jnp.pad(b1, (0, hid_p - hid)).astype(jnp.float32).reshape(1, hid_p)
    w2_p = jnp.pad(w2, ((0, hid_p - hid), (0, dim_p - dim))).astype(compute_dtype)
    b2_p = jnp.pad(b2, (0, dim_p - dim)).astype(jnp.float32).reshape(1, dim_p)

    return dict(w1=w1_p, b1=b1_p, w2=w2_p, b2=b2_p,
                dim=dim, hid=hid, dim_p=dim_p, hid_p=hid_p, th=th, tm=int(tm),
                compute_dtype=compute_dtype, out_dtype=out_dtype,
                use_scratch=use_scratch)


# ---------------------------------------------------------------------------
# Forward
# ---------------------------------------------------------------------------

def mlp_block(x, params):
    """x: (..., dim) -> (..., dim).  `params` from prepare_mlp_params."""
    orig_shape = x.shape
    dim, dim_p = params["dim"], params["dim_p"]
    hid_p, th = params["hid_p"], params["th"]
    cdt, odt = params["compute_dtype"], params["out_dtype"]
    use_scratch = params["use_scratch"]
    assert orig_shape[-1] == dim

    x2d = x.reshape(-1, dim)
    M = x2d.shape[0]

    # Row tile: clamp to M, round to the packed sublane tile of the dtypes in play.
    sub = max(_sublane(cdt), _sublane(odt))
    tm_eff = min(params["tm"], _round_up(M, sub))
    M_p = _round_up(M, tm_eff)
    # Guarantee >=2 row tiles when possible so the "parallel" axis can shard across
    # TensorCores (v7x has 2 TCs per chip; megacore on v5e/v6e).
    if M_p // tm_eff == 1 and tm_eff >= 2 * sub:
        tm_eff = _round_up(tm_eff // 2, sub)
        M_p = _round_up(M, tm_eff)

    x_p = x2d
    if (M_p, dim_p) != (M, dim):
        x_p = jnp.pad(x2d, ((0, M_p - M), (0, dim_p - dim)))
    x_p = x_p.astype(cdt)

    n_i = M_p // tm_eff
    n_j = hid_p // th

    tile_bytes = _tile_bytes(tm_eff, dim_p, th, cdt, odt, use_scratch)
    vmem_cap = _vmem_capacity_bytes()
    vmem_limit = int(min(max(int(tile_bytes * 1.25), 16 * 1024 * 1024),
                         int(vmem_cap * 0.85)))

    cb = jnp.dtype(cdt).itemsize
    ob = jnp.dtype(odt).itemsize
    cost = pl.CostEstimate(
        flops=int(4 * M_p * dim_p * hid_p),
        transcendentals=0,
        bytes_accessed=int(M_p * dim_p * cb                    # x read
                           + n_i * 2 * dim_p * hid_p * cb      # W1+W2 streamed per row tile
                           + n_i * (hid_p + dim_p) * 4         # biases per row tile
                           + M_p * dim_p * ob),                # output write
    )

    kernel = _mlp_kernel_acc if use_scratch else _mlp_kernel_f32out
    scratch = [pltpu.VMEM((tm_eff, dim_p), jnp.float32)] if use_scratch else []

    out = pl.pallas_call(
        kernel,
        out_shape=jax.ShapeDtypeStruct((M_p, dim_p), odt),
        grid_spec=pltpu.PrefetchScalarGridSpec(
            num_scalar_prefetch=0,
            grid=(n_i, n_j),
            in_specs=[
                pl.BlockSpec((tm_eff, dim_p), lambda i, j: (i, 0)),  # x row tile
                pl.BlockSpec((dim_p, th), lambda i, j: (0, j)),      # W1 hid-chunk
                pl.BlockSpec((1, th), lambda i, j: (0, j)),          # b1 hid-chunk
                pl.BlockSpec((th, dim_p), lambda i, j: (j, 0)),      # W2 hid-chunk
                pl.BlockSpec((1, dim_p), lambda i, j: (0, 0)),       # b2 (constant)
            ],
            out_specs=pl.BlockSpec((tm_eff, dim_p), lambda i, j: (i, 0)),
            scratch_shapes=scratch,
        ),
        compiler_params=pltpu.CompilerParams(
            dimension_semantics=("parallel", "arbitrary"),
            vmem_limit_bytes=vmem_limit,
        ),
        cost_estimate=cost,
    )(x_p, params["w1"], params["b1"], params["w2"], params["b2"])

    if (M_p, dim_p) != (M, dim):
        out = out[:M, :dim]
    return out.reshape(orig_shape)


# ---------------------------------------------------------------------------
# Deterministic init matching the PyTorch module's __init__
# ---------------------------------------------------------------------------

def init_params(key, dim, hid_dim, dtype=jnp.float32):
    """nn1/nn2: xavier_uniform weights (stored transposed, (in, out)), normal(1e-6) biases."""
    k1, k2, k3, k4 = jax.random.split(key, 4)
    bound1 = math.sqrt(6.0 / (dim + hid_dim))
    w1 = jax.random.uniform(k1, (dim, hid_dim), dtype, minval=-bound1, maxval=bound1)
    b1 = (1e-6 * jax.random.normal(k2, (hid_dim,))).astype(dtype)
    bound2 = math.sqrt(6.0 / (hid_dim + dim))
    w2 = jax.random.uniform(k3, (hid_dim, dim), dtype, minval=-bound2, maxval=bound2)
    b2 = (1e-6 * jax.random.normal(k4, (dim,))).astype(dtype)
    return w1, b1, w2, b2


def _ref_mlp(x, w1, b1, w2, b2):
    return jnp.maximum(x @ w1 + b1, 0.0) @ w2 + b2


if __name__ == "__main__":
    key = jax.random.PRNGKey(0)
    kx1, kp1, kx2, kp2, kx3, kp3 = jax.random.split(key, 6)

    # Test 1: f32 matmul path, exact-ish check (small dims -> exercises lane padding).
    batch, seq, dim, hid_dim = 2, 8, 32, 64
    x = jax.random.normal(kx1, (batch, seq, dim), dtype=jnp.float32)
    w1, b1, w2, b2 = init_params(kp1, dim, hid_dim)
    params_f32 = prepare_mlp_params(w1, b1, w2, b2,
                                    compute_dtype=jnp.float32, out_dtype=jnp.float32)
    out = jax.block_until_ready(mlp_block(x, params_f32))
    ref = _ref_mlp(x, w1, b1, w2, b2)
    assert out.shape == x.shape
    assert jnp.allclose(out, ref, atol=1e-4, rtol=1e-4)

    # Test 2: default bf16-operand path (f32 accumulation/output); th_max forces multiple
    # hid chunks so the accumulate-into-output reduction path is exercised, and M/dim
    # exercise row + lane padding.
    batch2, seq2, dim2, hid2 = 2, 24, 160, 640
    x2 = jax.random.normal(kx2, (batch2, seq2, dim2), dtype=jnp.float32)
    p2 = init_params(kp2, dim2, hid2)
    params_bf16 = prepare_mlp_params(*p2, th_max=256)  # compute bf16, out f32 (defaults)
    out2 = jax.block_until_ready(mlp_block(x2, params_bf16))
    ref2 = _ref_mlp(x2, *p2)
    assert out2.shape == x2.shape
    assert jnp.allclose(out2, ref2, atol=5e-2, rtol=5e-2)

    # Test 3: full bf16 in/out (exercises the f32-scratch accumulator kernel).
    x3 = jax.random.normal(kx3, (batch, seq, dim), dtype=jnp.float32).astype(jnp.bfloat16)
    p3 = init_params(kp3, dim, hid_dim)
    params_b = prepare_mlp_params(*p3, compute_dtype=jnp.bfloat16, out_dtype=jnp.bfloat16)
    out3 = jax.block_until_ready(mlp_block(x3, params_b))
    ref3 = _ref_mlp(x3.astype(jnp.float32), *p3)
    assert out3.shape == x3.shape and out3.dtype == jnp.bfloat16
    assert jnp.allclose(out3.astype(jnp.float32), ref3, atol=1e-1, rtol=1e-1)

    print("KERNEL_OK")
</pallas_src>

<mosaic_0001>
module attributes {stable_mosaic.version = 11 : i64} {
  func.func @_mlp_kernel_f32out(%arg0: i32, %arg1: i32, %arg2: memref<8x128xf32, #tpu.memory_space<vmem>>, %arg3: memref<128x128xf32, #tpu.memory_space<vmem>>, %arg4: memref<1x128xf32, #tpu.memory_space<vmem>>, %arg5: memref<128x128xf32, #tpu.memory_space<vmem>>, %arg6: memref<1x128xf32, #tpu.memory_space<vmem>>, %arg7: memref<8x128xf32, #tpu.memory_space<vmem>>) attributes {dimension_semantics = [#tpu.dimension_semantics<parallel>, #tpu.dimension_semantics<arbitrary>], iteration_bounds = array<i64: 2, 1>, scalar_prefetch = 0 : i64, scratch_operands = 0 : i64, tpu.core_type = #tpu.core_type<tc>, window_params = [{transform_indices = @transform_0, window_bounds = array<i64: 8, 128>}, {transform_indices = @transform_1, window_bounds = array<i64: 128, 128>}, {transform_indices = @transform_2, window_bounds = array<i64: 1, 128>}, {transform_indices = @transform_3, window_bounds = array<i64: 128, 128>}, {pipeline_mode = #tpu.pipeline_mode<synchronous>, transform_indices = @transform_4, window_bounds = array<i64: 1, 128>}, {transform_indices = @transform_5, window_bounds = array<i64: 8, 128>}]} {
    %c0 = arith.constant 0 : index
    %c0_0 = arith.constant 0 : index
    %0 = vector.load %arg2[%c0, %c0_0] : memref<8x128xf32, #tpu.memory_space<vmem>>, vector<8x128xf32>
    %c0_1 = arith.constant 0 : index
    %c0_2 = arith.constant 0 : index
    %1 = vector.load %arg3[%c0_1, %c0_2] : memref<128x128xf32, #tpu.memory_space<vmem>>, vector<128x128xf32>
    %cst = arith.constant dense<0.000000e+00> : vector<8x128xf32>
    %2 = tpu.matmul %0, %1, %cst {dimension_numbers = #tpu.dot_dimension_numbers<[1], [0], [0], [1], [0, 0, 1, 1], [], []>} : vector<8x128xf32>, vector<128x128xf32>, vector<8x128xf32> -> vector<8x128xf32>
    %c0_3 = arith.constant 0 : index
    %c0_4 = arith.constant 0 : index
    %3 = vector.load %arg4[%c0_3, %c0_4] : memref<1x128xf32, #tpu.memory_space<vmem>>, vector<1x128xf32>
    %4 = vector.broadcast %3 : vector<1x128xf32> to vector<8x128xf32>
    %5 = arith.addf %2, %4 : vector<8x128xf32>
    %cst_5 = arith.constant 0.000000e+00 : f32
    %6 = vector.broadcast %cst_5 : f32 to vector<8x128xf32>
    %7 = arith.maximumf %5, %6 : vector<8x128xf32>
    %c0_6 = arith.constant 0 : index
    %c0_7 = arith.constant 0 : index
    %8 = vector.load %arg5[%c0_6, %c0_7] : memref<128x128xf32, #tpu.memory_space<vmem>>, vector<128x128xf32>
    %cst_8 = arith.constant dense<0.000000e+00> : vector<8x128xf32>
    %9 = tpu.matmul %7, %8, %cst_8 {dimension_numbers = #tpu.dot_dimension_numbers<[1], [0], [0], [1], [0, 0, 1, 1], [], []>} : vector<8x128xf32>, vector<128x128xf32>, vector<8x128xf32> -> vector<8x128xf32>
    %c0_i32 = arith.constant 0 : i32
    %10 = arith.cmpi eq, %arg1, %c0_i32 : i32
    %11 = arith.extui %10 : i1 to i32
    %c0_i32_9 = arith.constant 0 : i32
    %12 = arith.cmpi ne, %11, %c0_i32_9 : i32
    scf.if %12 {
      %c0_12 = arith.constant 0 : index
      %c0_13 = arith.constant 0 : index
      %16 = vector.load %arg6[%c0_12, %c0_13] : memref<1x128xf32, #tpu.memory_space<vmem>>, vector<1x128xf32>
      %17 = vector.broadcast %16 : vector<1x128xf32> to vector<8x128xf32>
      %18 = arith.addf %9, %17 : vector<8x128xf32>
      %c0_14 = arith.constant 0 : index
      %c0_15 = arith.constant 0 : index
      %19 = vector.load %arg7[%c0_14, %c0_15] : memref<8x128xf32, #tpu.memory_space<vmem>>, vector<8x128xf32>
      tpu.vector_store %arg7[%c0_14, %c0_15], %18 {strides = array<i32>} : memref<8x128xf32, #tpu.memory_space<vmem>>, vector<8x128xf32>,
    } else {
    }
    %c0_i32_10 = arith.constant 0 : i32
    %13 = arith.cmpi sgt, %arg1, %c0_i32_10 : i32
    %14 = arith.extui %13 : i1 to i32
    %c0_i32_11 = arith.constant 0 : i32
    %15 = arith.cmpi ne, %14, %c0_i32_11 : i32
    scf.if %15 {
      %c0_12 = arith.constant 0 : index
      %c0_13 = arith.constant 0 : index
      %16 = vector.load %arg7[%c0_12, %c0_13] : memref<8x128xf32, #tpu.memory_space<vmem>>, vector<8x128xf32>
      %17 = arith.addf %16, %9 : vector<8x128xf32>
      %c0_14 = arith.constant 0 : index
      %c0_15 = arith.constant 0 : index
      %18 = vector.load %arg7[%c0_14, %c0_15] : memref<8x128xf32, #tpu.memory_space<vmem>>, vector<8x128xf32>
      tpu.vector_store %arg7[%c0_14, %c0_15], %17 {strides = array<i32>} : memref<8x128xf32, #tpu.memory_space<vmem>>, vector<8x128xf32>,
    } else {
    }
    return
  }
  func.func @transform_0(%arg0: i32, %arg1: i32) -> (i32, i32) {
    %c0_i32 = arith.constant 0 : i32
    %c0_i32_0 = arith.constant 0 : i32
    return %arg0, %c0_i32 : i32, i32
  }
  func.func @transform_1(%arg0: i32, %arg1: i32) -> (i32, i32) {
    %c0_i32 = arith.constant 0 : i32
    %c0_i32_0 = arith.constant 0 : i32
    return %c0_i32, %arg1 : i32, i32
  }
  func.func @transform_2(%arg0: i32, %arg1: i32) -> (i32, i32) {
    %c0_i32 = arith.constant 0 : i32
    %c0_i32_0 = arith.constant 0 : i32
    return %c0_i32, %arg1 : i32, i32
  }
  func.func @transform_3(%arg0: i32, %arg1: i32) -> (i32, i32) {
    %c0_i32 = arith.constant 0 : i32
    %c0_i32_0 = arith.constant 0 : i32
    return %arg1, %c0_i32 : i32, i32
  }
  func.func @transform_4(%arg0: i32, %arg1: i32) -> (i32, i32) {
    %c0_i32 = arith.constant 0 : i32
    %c0_i32_0 = arith.constant 0 : i32
    %c0_i32_1 = arith.constant 0 : i32
    return %c0_i32, %c0_i32_0 : i32, i32
  }
  func.func @transform_5(%arg0: i32, %arg1: i32) -> (i32, i32) {
    %c0_i32 = arith.constant 0 : i32
    %c0_i32_0 = arith.constant 0 : i32
    return %arg0, %c0_i32 : i32, i32
  }
}

</mosaic_0001>

<llo_original>
// kernel: tpu_custom_call.1
$region0: #{tpu_custom_call.1}
  #allocation0 [shape = 'u32[]', space=smem, size = 0x4, offset = 0x4, fixed_abs, tag = 'smem constant byte address 0x4 - core index']
  #allocation1 [shape = 'u32[144,128]{1,0:T(1,128)}', space=vmem, size = 0x12000, scoped, tag = 'internal scratch']
  %s0 = inlined_call_operand.hbm [shape: f32[16,128], index: 0, kind: input, shape index: {}]
  %s1 = inlined_call_operand.hbm [shape: f32[128,128], index: 1, kind: input, shape index: {}]
  %s2 = inlined_call_operand.vmem [shape: f32[1,128], index: 2, kind: input, shape index: {}]
  %s3 = inlined_call_operand.hbm [shape: f32[128,128], index: 3, kind: input, shape index: {}]
  %s4 = inlined_call_operand.vmem [shape: f32[1,128], index: 4, kind: input, shape index: {}]
  %s5 = inlined_call_operand.hbm [shape: f32[16,128], index: 5, kind: output, shape index: {}]
  %s6 = sld [smem:[#allocation0]]
  $region73: #{tpu_custom_call.1} parent=0
    _
  %s8 = ssub.s32 1, %s6
  %s9 = scalar_select 0, %s8, %s6
  $region1: #{tpu_custom_call.1} parent=0
    #allocation2 [shape = 'u8[8192]{0}', space=vmem, size = 0x2000, scoped, tag = 'input window, operand 0']
    #allocation3 [shape = 's32[2]{0}', space=sflag, size = 0x8, scoped, tag = 'scoped memory for tpu_custom_call.1']
    #allocation4 [shape = 's32[2]{0}', space=sflag, size = 0x8, scoped, tag = 'scoped memory for tpu_custom_call.1']
    #allocation5 [shape = 'u8[65536]{0}', space=vmem, size = 0x10000, scoped, tag = 'input window, operand 1, single buffered']
    #allocation6 [shape = 's32[1]{0}', space=sflag, size = 0x4, scoped, tag = 'scoped memory for tpu_custom_call.1']
    #allocation7 [shape = 'u8[65536]{0}', space=vmem, size = 0x10000, scoped, tag = 'input window, operand 3, single buffered']
    #allocation8 [shape = 'u8[8192]{0}', space=vmem, size = 0x2000, scoped, tag = 'output window, operand 0']
    %10 = vsyncpa [#allocation3], 0
    %s11 = scalar_lea.sflag [#allocation3], 1
    %12 = vsyncpa %s11, 0
    %13 = vsyncpa [#allocation6], 0
    %14 = vsyncpa [#allocation4], 0
    %s15 = scalar_lea.sflag [#allocation4], 1
    %16 = vsyncpa %s15, 0
    loop: start=0, step=1, limit=4
    $region2: #{tpu_custom_call.1} parent=1 // loop_pre_header
      _
    $region3: #{tpu_custom_call.1} parent=1 // loop_header
      %s18 = sphi 0, %s22
      %p19 = scmp.ge.s32.totalorder %s18, 4
      %s25 = sphi 0, %s37
      %s26 = sphi 0, %s33
      %s27 = sphi 0, %s25
      %s28 = sphi 0, %s26
      %s29 = sphi 0, %s27
      %s30 = sphi 0, %s28
      %s40 = sphi 0, %s42
      %s43 = sphi 0, %s40
      %s44 = sphi 0, %s43
      %s60 = sphi 0, %s44
      %s66 = sphi 0, %s68
      %s69 = sphi 0, %s66
      %s70 = sphi 0, %s69
      %s86 = sphi 0, %s70
      %s92 = sphi 0, %s94
      %s95 = sphi 0, %s92
      %s96 = sphi 0, %s95
      %s112 = sphi 0, %s96
      %s118 = sphi 0, %s120
      %s121 = sphi 0, %s118
      %s122 = sphi 0, %s121
      %s138 = sphi 0, %s122
      %s142 = sphi 0, %s142
      %s144 = sphi 0, %s142
      %s145 = sphi 0, %s144
      %s159 = sphi 0, %s145
      %s165 = sphi 0, %s167
      %s168 = sphi 0, %s165
      %s169 = sphi 0, %s168
      %s185 = sphi 0, %s169
    $region4: #{tpu_custom_call.1} parent=1 // loop_header_branch
      %21 = sbr.rel (%p19) target = $region8
    $region5: #{tpu_custom_call.1} parent=1 // loop_body
      %s23 = ssub.s32 %s18, 1
      %s24 = ssub.s32 %s18, 2
      %s31 = sadd.s32 1, %s26
      %p32 = scmp.ge.s32.totalorder %s31, 1
      %s33 = scalar_select %p32, 0, %s31
      %s34 = sadd.s32 1, %s25
      %s35 = scalar_select %p32, %s34, %s25
      %p36 = scmp.ge.s32.totalorder %s35, 2
      %s37 = scalar_select %p36, 0, %s35
      %s38 = ssub.s32 %s25, %s37
      %p39 = scmp.eq.s32.totalorder %s38, 0
      %s41 = sadd.s32 %s40, 1
      %s42 = scalar_select %p39, %s40, %s41
      %p45 = pneg %p39
      %p46 = scmp.eq.s32.totalorder %s18, 1
      %p47 = por %p45, %p46
      %p48 = scmp.ne.s32.totalorder %s40, %s43
      %p49 = scmp.eq.s32.totalorder %s18, 0
      %p50 = por %p48, %p49
      %p51 = scmp.ne.s32.totalorder %s40, %s43
      %p52 = scmp.eq.s32.totalorder %s23, 1
      %p53 = por %p51, %p52
      %p54 = scmp.ne.s32.totalorder %s43, %s44
      %p55 = scmp.eq.s32.totalorder %s23, 0
      %p56 = por %p54, %p55
      %p57 = scmp.ne.s32.totalorder %s43, %s44
      %p58 = scmp.eq.s32.totalorder %s24, 1
      %p59 = por %p57, %p58
      %p61 = scmp.ne.s32.totalorder %s44, %s60
      %p62 = scmp.eq.s32.totalorder %s24, 0
      %p63 = por %p61, %p62
      %s64 = ssub.s32 %s26, %s33
      %p65 = scmp.eq.s32.totalorder %s64, 0
      %s67 = sadd.s32 %s66, 1
      %s68 = scalar_select %p65, %s66, %s67
      %p71 = pneg %p65
      %p72 = scmp.eq.s32.totalorder %s18, 1
      %p73 = por %p71, %p72
      %p74 = scmp.ne.s32.totalorder %s66, %s69
      %p75 = scmp.eq.s32.totalorder %s18, 0
      %p76 = por %p74, %p75
      %p77 = scmp.ne.s32.totalorder %s66, %s69
      %p78 = scmp.eq.s32.totalorder %s23, 1
      %p79 = por %p77, %p78
      %p80 = scmp.ne.s32.totalorder %s69, %s70
      %p81 = scmp.eq.s32.totalorder %s23, 0
      %p82 = por %p80, %p81
      %p83 = scmp.ne.s32.totalorder %s69, %s70
      %p84 = scmp.eq.s32.totalorder %s24, 1
      %p85 = por %p83, %p84
      %p87 = scmp.ne.s32.totalorder %s70, %s86
      %p88 = scmp.eq.s32.totalorder %s24, 0
      %p89 = por %p87, %p88
      %s90 = ssub.s32 %s26, %s33
      %p91 = scmp.eq.s32.totalorder %s90, 0
      %s93 = sadd.s32 %s92, 1
      %s94 = scalar_select %p91, %s92, %s93
      %p97 = pneg %p91
      %p98 = scmp.eq.s32.totalorder %s18, 1
      %p99 = por %p97, %p98
      %p100 = scmp.ne.s32.totalorder %s92, %s95
      %p101 = scmp.eq.s32.totalorder %s18, 0
      %p102 = por %p100, %p101
      %p103 = scmp.ne.s32.totalorder %s92, %s95
      %p104 = scmp.eq.s32.totalorder %s23, 1
      %p105 = por %p103, %p104
      %p106 = scmp.ne.s32.totalorder %s95, %s96
      %p107 = scmp.eq.s32.totalorder %s23, 0
      %p108 = por %p106, %p107
      %p109 = scmp.ne.s32.totalorder %s95, %s96
      %p110 = scmp.eq.s32.totalorder %s24, 1
      %p111 = por %p109, %p110
      %p113 = scmp.ne.s32.totalorder %s96, %s112
      %p114 = scmp.eq.s32.totalorder %s24, 0
      %p115 = por %p113, %p114
      %s116 = ssub.s32 %s26, %s33
      %p117 = scmp.eq.s32.totalorder %s116, 0
      %s119 = sadd.s32 %s118, 1
      %s120 = scalar_select %p117, %s118, %s119
      %p123 = pneg %p117
      %p124 = scmp.eq.s32.totalorder %s18, 1
      %p125 = por %p123, %p124
      %p126 = scmp.ne.s32.totalorder %s118, %s121
      %p127 = scmp.eq.s32.totalorder %s18, 0
      %p128 = por %p126, %p127
      %p129 = scmp.ne.s32.totalorder %s118, %s121
      %p130 = scmp.eq.s32.totalorder %s23, 1
      %p131 = por %p129, %p130
      %p132 = scmp.ne.s32.totalorder %s121, %s122
      %p133 = scmp.eq.s32.totalorder %s23, 0
      %p134 = por %p132, %p133
      %p135 = scmp.ne.s32.totalorder %s121, %s122
      %p136 = scmp.eq.s32.totalorder %s24, 1
      %p137 = por %p135, %p136
      %p139 = scmp.ne.s32.totalorder %s122, %s138
      %p140 = scmp.eq.s32.totalorder %s24, 0
      %p141 = por %p139, %p140
      %s143 = sadd.s32 %s142, 1
      %p146 = scmp.eq.s32.totalorder %s18, 1
      %p147 = scmp.ne.s32.totalorder %s142, %s144
      %p148 = scmp.eq.s32.totalorder %s18, 0
      %p149 = por %p147, %p148
      %p150 = scmp.ne.s32.totalorder %s142, %s144
      %p151 = scmp.eq.s32.totalorder %s23, 1
      %p152 = por %p150, %p151
      %p153 = scmp.ne.s32.totalorder %s144, %s145
      %p154 = scmp.eq.s32.totalorder %s23, 0
      %p155 = por %p153, %p154
      %p156 = scmp.ne.s32.totalorder %s144, %s145
      %p157 = scmp.eq.s32.totalorder %s24, 1
      %p158 = por %p156, %p157
      %p160 = scmp.ne.s32.totalorder %s145, %s159
      %p161 = scmp.eq.s32.totalorder %s24, 0
      %p162 = por %p160, %p161
      %s163 = ssub.s32 %s25, %s37
      %p164 = scmp.eq.s32.totalorder %s163, 0
      %s166 = sadd.s32 %s165, 1
      %s167 = scalar_select %p164, %s165, %s166
      %p170 = pneg %p164
      %p171 = scmp.eq.s32.totalorder %s18, 1
      %p172 = por %p170, %p171
      %p173 = scmp.ne.s32.totalorder %s165, %s168
      %p174 = scmp.eq.s32.totalorder %s18, 0
      %p175 = por %p173, %p174
      %p176 = scmp.ne.s32.totalorder %s165, %s168
      %p177 = scmp.eq.s32.totalorder %s23, 1
      %p178 = por %p176, %p177
      %p179 = scmp.ne.s32.totalorder %s168, %s169
      %p180 = scmp.eq.s32.totalorder %s23, 0
      %p181 = por %p179, %p180
      %p182 = scmp.ne.s32.totalorder %s168, %s169
      %p183 = scmp.eq.s32.totalorder %s24, 1
      %p184 = por %p182, %p183
      %p186 = scmp.ne.s32.totalorder %s169, %s185
      %p187 = scmp.eq.s32.totalorder %s24, 0
      %p188 = por %p186, %p187
      %p189 = scmp.le.s32.totalorder 1, %s18
      %p190 = scmp.lt.s32.totalorder %s18, 3
      %p191 = pnand %p189, %p190
      %p192 = pneg %p191
      // Predicated region
      $region9: #{tpu_custom_call.1} parent=5 // pred_check
        _
      $region10: #{tpu_custom_call.1} parent=5 // pred_check_branch
        %194 = sbr.rel (%p191) target = $region12
      $region11: #{tpu_custom_call.1} parent=5 // pred_region
        %s195 = ssub.s32 %s18, 1
        // Predicated region
        $region13: #{tpu_custom_call.1} parent=11 // pred_check
          %p196 = pneg %p82
        $region14: #{tpu_custom_call.1} parent=11 // pred_check_branch
          %198 = sbr.rel (%p196) target = $region16
        $region15: #{tpu_custom_call.1} parent=11 // pred_region
          %s200 = ssub.s32 2048, 2048
          %201 = vsyncadd [#allocation6], %s200
          %s202 = smul.addr %s28, 128
          %s203 = scalar_lea.hbm %s1, %s202
          %s204 = sshll.u32 [#allocation5], 4
          %s205 = int_to_ptr.vmem [resolvable:$true] %s204
          %210 = dma.hbm_to_vmem [thread:$0]  %s203, 2048, %s205, [#allocation6], 128, 128, 8
        $region16: #{tpu_custom_call.1} parent=11 // pred_fallthru
          _
        // Predicated region
        $region17: #{tpu_custom_call.1} parent=11 // pred_check
          %p211 = pneg %p108
        $region18: #{tpu_custom_call.1} parent=11 // pred_check_branch
          %213 = sbr.rel (%p211) target = $region20
        $region19: #{tpu_custom_call.1} parent=11 // pred_region
          %p214 = scmp.lt.s32.totalorder %s28, 0
          %s215 = scalar_select %p214, %s28, 0
          %s216 = scalar_lea.vmem %s2, %s215
        $region20: #{tpu_custom_call.1} parent=11 // pred_fallthru
          _
        // Predicated region
        $region21: #{tpu_custom_call.1} parent=11 // pred_check
          %p217 = pneg %p134
        $region22: #{tpu_custom_call.1} parent=11 // pred_check_branch
          %219 = sbr.rel (%p217) target = $region24
        $region23: #{tpu_custom_call.1} parent=11 // pred_region
          %s220 = smul.u32 16, %s28
          %s222 = ssub.s32 2048, 2048
          %223 = vsyncadd [#allocation6], %s222
          %s224 = smul.addr %s220, 128
          %s225 = scalar_lea.hbm %s3, %s224
          %s226 = sshll.u32 [#allocation7], 4
          %s227 = int_to_ptr.vmem [resolvable:$true] %s226
          %232 = dma.hbm_to_vmem [thread:$0]  %s225, 2048, %s227, [#allocation6], 128, 128, 8
        $region24: #{tpu_custom_call.1} parent=11 // pred_fallthru
          _
        // Predicated region
        $region25: #{tpu_custom_call.1} parent=11 // pred_check
          %p233 = pneg %p155
        $region26: #{tpu_custom_call.1} parent=11 // pred_check_branch
          %235 = sbr.rel (%p233) target = $region28
        $region27: #{tpu_custom_call.1} parent=11 // pred_region
          _
        $region28: #{tpu_custom_call.1} parent=11 // pred_fallthru
          _
      $region12: #{tpu_custom_call.1} parent=5 // pred_fallthru
        _
      %p236 = scmp.lt.s32.totalorder %s18, 2
      // Predicated region
      $region29: #{tpu_custom_call.1} parent=5 // pred_check
        %p237 = pneg %p236
      $region30: #{tpu_custom_call.1} parent=5 // pred_check_branch
        %239 = sbr.rel (%p237) target = $region32
      $region31: #{tpu_custom_call.1} parent=5 // pred_region
        // Predicated region
        $region33: #{tpu_custom_call.1} parent=31 // pred_check
          %p240 = pneg %p50
        $region34: #{tpu_custom_call.1} parent=31 // pred_check_branch
          %242 = sbr.rel (%p240) target = $region36
        $region35: #{tpu_custom_call.1} parent=31 // pred_region
          %s243 = sand.u32 %s40, 1
          %s244 = scalar_lea.sflag [#allocation3], %s243
          %s245 = sand.u32 %s40, 1
          %s246 = smul.addr %s245, 8
          %s247 = scalar_lea.vmem [#allocation2], %s246
          %s249 = ssub.s32 128, 128
          %250 = vsyncadd %s244, %s249
          %s251 = smul.addr %s25, 128
          %s252 = scalar_lea.hbm %s0, %s251
          %s254 = sshll.u32 %s247, 4
          %s255 = int_to_ptr.vmem [resolvable:$true] %s254
          %257 = dma.hbm_to_vmem [thread:$0]  %s252, 128, %s255, %s244
        $region36: #{tpu_custom_call.1} parent=31 // pred_fallthru
          _
      $region32: #{tpu_custom_call.1} parent=5 // pred_fallthru
        _
      %p258 = scmp.le.s32.totalorder 1, %s18
      %p259 = scmp.lt.s32.totalorder %s18, 3
      %p260 = pnand %p258, %p259
      %p261 = pneg %p260
      // Predicated region
      $region37: #{tpu_custom_call.1} parent=5 // pred_check
        _
      $region38: #{tpu_custom_call.1} parent=5 // pred_check_branch
        %263 = sbr.rel (%p260) target = $region40
      $region39: #{tpu_custom_call.1} parent=5 // pred_region
        %s264 = ssub.s32 %s18, 1
        %s265 = sand.u32 %s43, 1
        %s266 = scalar_lea.sflag [#allocation3], %s265
        %s267 = sand.u32 %s43, 1
        %s268 = smul.addr %s267, 8
        %s269 = scalar_lea.vmem [#allocation2], %s268
        // Predicated region
        $region41: #{tpu_custom_call.1} parent=39 // pred_check
          %p270 = pneg %p56
        $region42: #{tpu_custom_call.1} parent=39 // pred_check_branch
          %272 = sbr.rel (%p270) target = $region44
        $region43: #{tpu_custom_call.1} parent=39 // pred_region
          %273 = dma.done %s266, 128
        $region44: #{tpu_custom_call.1} parent=39 // pred_fallthru
          _
        // Predicated region
        $region45: #{tpu_custom_call.1} parent=39 // pred_check
          %p274 = pneg %p82
        $region46: #{tpu_custom_call.1} parent=39 // pred_check_branch
          %276 = sbr.rel (%p274) target = $region48
        $region47: #{tpu_custom_call.1} parent=39 // pred_region
          %277 = dma.done [#allocation6], 2048
        $region48: #{tpu_custom_call.1} parent=39 // pred_fallthru
          _
        // Predicated region
        $region49: #{tpu_custom_call.1} parent=39 // pred_check
          %p278 = pneg %p134
        $region50: #{tpu_custom_call.1} parent=39 // pred_check_branch
          %280 = sbr.rel (%p278) target = $region52
        $region51: #{tpu_custom_call.1} parent=39 // pred_region
          %281 = dma.done [#allocation6], 2048
        $region52: #{tpu_custom_call.1} parent=39 // pred_fallthru
          _
        %s282 = sand.u32 %s43, 1
        %s283 = scalar_lea.sflag [#allocation3], %s282
        %s284 = sand.u32 %s43, 1
        %s285 = smul.addr %s284, 8
        %s286 = scalar_lea.vmem [#allocation2], %s285
        %p287 = pneg %p56
        %p288 = pneg %p53
        %p289 = pneg %p82
        %p290 = pneg %p79
        %p291 = scmp.lt.s32.totalorder %s28, 0
        %s292 = scalar_select %p291, %s28, 0
        %s293 = scalar_lea.vmem %s2, %s292
        %p294 = pneg %p108
        %p295 = pneg %p105
        %p296 = pneg %p134
        %p297 = pneg %p131
        %p298 = pneg %p155
        %p299 = pneg %p152
        %p300 = pneg %p181
        %p301 = pneg %p178
        %s302 = sand.u32 %s168, 1
        %s303 = scalar_lea.sflag [#allocation4], %s302
        %s304 = sand.u32 %s168, 1
        %s305 = smul.addr %s304, 8
        %s306 = scalar_lea.vmem [#allocation8], %s305
        %p307 = scmp.lt.s32.totalorder %s28, 0
        %s308 = scalar_select %p307, %s28, 0
        %s309 = scalar_lea.vmem %s2, %s308
        %s310 = smul.u32 16, %s28
        %v311 = vld [vmem:[%s269] sm:$0xff]
        %v312 = vld [vmem:[#allocation5] sm:$0xff]
        %v313 = vld [vmem:[#allocation5 + $0x8] sm:$0xff]
        %v314 = vld [vmem:[#allocation5 + $0x10] sm:$0xff]
        %v315 = vld [vmem:[#allocation5 + $0x18] sm:$0xff]
        %v316 = vld [vmem:[#allocation5 + $0x20] sm:$0xff]
        %v317 = vld [vmem:[#allocation5 + $0x28] sm:$0xff]
        %v318 = vld [vmem:[#allocation5 + $0x30] sm:$0xff]
        %v319 = vld [vmem:[#allocation5 + $0x38] sm:$0xff]
        %v320 = vld [vmem:[#allocation5 + $0x40] sm:$0xff]
        %v321 = vld [vmem:[#allocation5 + $0x48] sm:$0xff]
        %v322 = vld [vmem:[#allocation5 + $0x50] sm:$0xff]
        %v323 = vld [vmem:[#allocation5 + $0x58] sm:$0xff]
        %v324 = vld [vmem:[#allocation5 + $0x60] sm:$0xff]
        %v325 = vld [vmem:[#allocation5 + $0x68] sm:$0xff]
        %v326 = vld [vmem:[#allocation5 + $0x70] sm:$0xff]
        %v327 = vld [vmem:[#allocation5 + $0x78] sm:$0xff]
        %v328 = vld [vmem:[%s309] sm:$0x1]
        %v330 = vlaneseq
        %v331 = vshrl.u32 %v330, 7
        %v332 = vsub.s32 0, %v331
        %v333 = vrot.slane %v328, %v332
        %335 = vmatprep.subr.mxu0 0.0
        %336 = vmatpush1.msra.mxu0 %v327
        %337 = vmatprep.subr.mxu0 0.0
        %338 = vmatpush1.msra.mxu0 %v326
        %339 = vmatprep.subr.mxu0 0.0
        %340 = vmatpush1.msra.mxu0 %v325
        %341 = vmatprep.subr.mxu0 0.0
        %342 = vmatpush1.msra.mxu0 %v324
        %343 = vmatprep.subr.mxu0 0.0
        %344 = vmatpush1.msra.mxu0 %v323
        %345 = vmatprep.subr.mxu0 0.0
        %346 = vmatpush1.msra.mxu0 %v322
        %347 = vmatprep.subr.mxu0 0.0
        %348 = vmatpush1.msra.mxu0 %v321
        %349 = vmatprep.subr.mxu0 0.0
        %350 = vmatpush1.msra.mxu0 %v320
        %351 = vmatprep.subr.mxu0 0.0
        %352 = vmatpush1.msra.mxu0 %v319
        %353 = vmatprep.subr.mxu0 0.0
        %354 = vmatpush1.msra.mxu0 %v318
        %355 = vmatprep.subr.mxu0 0.0
        %356 = vmatpush1.msra.mxu0 %v317
        %357 = vmatprep.subr.mxu0 0.0
        %358 = vmatpush1.msra.mxu0 %v316
        %359 = vmatprep.subr.mxu0 0.0
        %360 = vmatpush1.msra.mxu0 %v315
        %361 = vmatprep.subr.mxu0 0.0
        %362 = vmatpush1.msra.mxu0 %v314
        %363 = vmatprep.subr.mxu0 0.0
        %364 = vmatpush1.msra.mxu0 %v313
        %365 = vmatprep.subr.mxu0 0.0
        %366 = vmatpush1.msra.mxu0 %v312
        %367 = vmatprep.subr.mxu0 0.0
        %368 = vmatpush2.msra.mxu0 0.0
        %369 = vmatprep.subr.mxu0 0.0
        %370 = vmatpush2.msra.mxu0 0.0
        %371 = vmatprep.subr.mxu0 0.0
        %372 = vmatpush2.msra.mxu0 0.0
        %373 = vmatprep.subr.mxu0 0.0
        %374 = vmatpush2.msra.mxu0 0.0
        %375 = vmatprep.subr.mxu0 0.0
        %376 = vmatpush2.msra.mxu0 0.0
        %377 = vmatprep.subr.mxu0 0.0
        %378 = vmatpush2.msra.mxu0 0.0
        %379 = vmatprep.subr.mxu0 0.0
        %380 = vmatpush2.msra.mxu0 0.0
        %381 = vmatprep.subr.mxu0 0.0
        %382 = vmatpush2.msra.mxu0 0.0
        %383 = vmatprep.subr.mxu0 0.0
        %384 = vmatpush2.msra.mxu0 0.0
        %385 = vmatprep.subr.mxu0 0.0
        %386 = vmatpush2.msra.mxu0 0.0
        %387 = vmatprep.subr.mxu0 0.0
        %388 = vmatpush2.msra.mxu0 0.0
        %389 = vmatprep.subr.mxu0 0.0
        %390 = vmatpush2.msra.mxu0 0.0
        %391 = vmatprep.subr.mxu0 0.0
        %392 = vmatpush2.msra.mxu0 0.0
        %393 = vmatprep.subr.mxu0 0.0
        %394 = vmatpush2.msra.mxu0 0.0
        %395 = vmatprep.subr.mxu0 0.0
        %396 = vmatpush2.msra.mxu0 0.0
        %397 = vmatprep.subr.mxu0 0.0
        %398 = vmatpush2.msra.mxu0 0.0
        %399 = vmatprep.mubr.f32.mxu0 0.0
        %400 = vmatmul.mubr.f32.gmra.mxu0 %v311
        %v401 = vpop.f32.mrf.mxu0
        %v402 = vadd.f32 %v333, %v401
        %v403 = vpop.f32.mrf.mxu0
        %404 = vdwg.mxu0
        %v405 = vmax.f32 %v402, 0.0
        %v406 = vld [vmem:[#allocation7] sm:$0xff]
        %v407 = vld [vmem:[#allocation7 + $0x8] sm:$0xff]
        %v408 = vld [vmem:[#allocation7 + $0x10] sm:$0xff]
        %v409 = vld [vmem:[#allocation7 + $0x18] sm:$0xff]
        %v410 = vld [vmem:[#allocation7 + $0x20] sm:$0xff]
        %v411 = vld [vmem:[#allocation7 + $0x28] sm:$0xff]
        %v412 = vld [vmem:[#allocation7 + $0x30] sm:$0xff]
        %v413 = vld [vmem:[#allocation7 + $0x38] sm:$0xff]
        %v414 = vld [vmem:[#allocation7 + $0x40] sm:$0xff]
        %v415 = vld [vmem:[#allocation7 + $0x48] sm:$0xff]
        %v416 = vld [vmem:[#allocation7 + $0x50] sm:$0xff]
        %v417 = vld [vmem:[#allocation7 + $0x58] sm:$0xff]
        %v418 = vld [vmem:[#allocation7 + $0x60] sm:$0xff]
        %v419 = vld [vmem:[#allocation7 + $0x68] sm:$0xff]
        %v420 = vld [vmem:[#allocation7 + $0x70] sm:$0xff]
        %v421 = vld [vmem:[#allocation7 + $0x78] sm:$0xff]
        %422 = vmatprep.subr.mxu0 0.0
        %423 = vmatpush1.msra.mxu0 %v421
        %424 = vmatprep.subr.mxu0 0.0
        %425 = vmatpush1.msra.mxu0 %v420
        %426 = vmatprep.subr.mxu0 0.0
        %427 = vmatpush1.msra.mxu0 %v419
        %428 = vmatprep.subr.mxu0 0.0
        %429 = vmatpush1.msra.mxu0 %v418
        %430 = vmatprep.subr.mxu0 0.0
        %431 = vmatpush1.msra.mxu0 %v417
        %432 = vmatprep.subr.mxu0 0.0
        %433 = vmatpush1.msra.mxu0 %v416
        %434 = vmatprep.subr.mxu0 0.0
        %435 = vmatpush1.msra.mxu0 %v415
        %436 = vmatprep.subr.mxu0 0.0
        %437 = vmatpush1.msra.mxu0 %v414
        %438 = vmatprep.subr.mxu0 0.0
        %439 = vmatpush1.msra.mxu0 %v413
        %440 = vmatprep.subr.mxu0 0.0
        %441 = vmatpush1.msra.mxu0 %v412
        %442 = vmatprep.subr.mxu0 0.0
        %443 = vmatpush1.msra.mxu0 %v411
        %444 = vmatprep.subr.mxu0 0.0
        %445 = vmatpush1.msra.mxu0 %v410
        %446 = vmatprep.subr.mxu0 0.0
        %447 = vmatpush1.msra.mxu0 %v409
        %448 = vmatprep.subr.mxu0 0.0
        %449 = vmatpush1.msra.mxu0 %v408
        %450 = vmatprep.subr.mxu0 0.0
        %451 = vmatpush1.msra.mxu0 %v407
        %452 = vmatprep.subr.mxu0 0.0
        %453 = vmatpush1.msra.mxu0 %v406
        %454 = vmatprep.subr.mxu0 0.0
        %455 = vmatpush2.msra.mxu0 0.0
        %456 = vmatprep.subr.mxu0 0.0
        %457 = vmatpush2.msra.mxu0 0.0
        %458 = vmatprep.subr.mxu0 0.0
        %459 = vmatpush2.msra.mxu0 0.0
        %460 = vmatprep.subr.mxu0 0.0
        %461 = vmatpush2.msra.mxu0 0.0
        %462 = vmatprep.subr.mxu0 0.0
        %463 = vmatpush2.msra.mxu0 0.0
        %464 = vmatprep.subr.mxu0 0.0
        %465 = vmatpush2.msra.mxu0 0.0
        %466 = vmatprep.subr.mxu0 0.0
        %467 = vmatpush2.msra.mxu0 0.0
        %468 = vmatprep.subr.mxu0 0.0
        %469 = vmatpush2.msra.mxu0 0.0
        %470 = vmatprep.subr.mxu0 0.0
        %471 = vmatpush2.msra.mxu0 0.0
        %472 = vmatprep.subr.mxu0 0.0
        %473 = vmatpush2.msra.mxu0 0.0
        %474 = vmatprep.subr.mxu0 0.0
        %475 = vmatpush2.msra.mxu0 0.0
        %476 = vmatprep.subr.mxu0 0.0
        %477 = vmatpush2.msra.mxu0 0.0
        %478 = vmatprep.subr.mxu0 0.0
        %479 = vmatpush2.msra.mxu0 0.0
        %480 = vmatprep.subr.mxu0 0.0
        %481 = vmatpush2.msra.mxu0 0.0
        %482 = vmatprep.subr.mxu0 0.0
        %483 = vmatpush2.msra.mxu0 0.0
        %484 = vmatprep.subr.mxu0 0.0
        %485 = vmatpush2.msra.mxu0 0.0
        %486 = vmatprep.mubr.f32.mxu0 0.0
        %487 = vmatmul.mubr.f32.gmra.mxu0 %v405
        %v488 = vpop.f32.mrf.mxu0
        %v489 = vadd.f32 0.0, %v488
        %v490 = vpop.f32.mrf.mxu0
        %491 = vdwg.mxu0
        %p492 = scmp.eq.s32.totalorder %s28, 0
        // Predicated region
        $region53: #{tpu_custom_call.1} parent=39 // pred_check
          %p493 = pneg %p492
        $region54: #{tpu_custom_call.1} parent=39 // pred_check_branch
          %495 = sbr.rel (%p493) target = $region56
        $region55: #{tpu_custom_call.1} parent=39 // pred_region
          %v496 = vld [vmem:[%s4] sm:$0x1]
          %v498 = vlaneseq
          %v499 = vshrl.u32 %v498, 7
          %v500 = vsub.s32 0, %v499
          %v501 = vrot.slane %v496, %v500
          %v503 = vadd.f32 %v489, %v501
          %504 = vst [vmem:[%s306] sm:$0xff] %v503
        $region56: #{tpu_custom_call.1} parent=39 // pred_fallthru
          _
        %p505 = scmp.gt.s32.totalorder %s28, 0
        // Predicated region
        $region57: #{tpu_custom_call.1} parent=39 // pred_check
          %p506 = pneg %p505
        $region58: #{tpu_custom_call.1} parent=39 // pred_check_branch
          %508 = sbr.rel (%p506) target = $region60
        $region59: #{tpu_custom_call.1} parent=39 // pred_region
          %v509 = vld [vmem:[%s306] sm:$0xff]
          %v510 = vadd.f32 %v509, %v489
          %511 = vst [vmem:[%s306] sm:$0xff] %v510
        $region60: #{tpu_custom_call.1} parent=39 // pred_fallthru
          _
        %s512 = sand.u32 %s168, 1
        %s513 = scalar_lea.sflag [#allocation4], %s512
        %s514 = sand.u32 %s168, 1
        %s515 = smul.addr %s514, 8
        %s516 = scalar_lea.vmem [#allocation8], %s515
        // Predicated region
        $region61: #{tpu_custom_call.1} parent=39 // pred_check
          %p517 = pneg %p178
        $region62: #{tpu_custom_call.1} parent=39 // pred_check_branch
          %519 = sbr.rel (%p517) target = $region64
        $region63: #{tpu_custom_call.1} parent=39 // pred_region
          %s521 = ssub.s32 128, 128
          %522 = vsyncadd %s513, %s521
          %s523 = smul.addr %s27, 128
          %s524 = scalar_lea.hbm %s5, %s523
          %s526 = sshll.u32 %s516, 4
          %s527 = int_to_ptr.vmem [resolvable:$true] %s526
          %529 = dma.vmem_to_hbm [thread:$0]  %s527, 128, %s524, %s513
        $region64: #{tpu_custom_call.1} parent=39 // pred_fallthru
          _
      $region40: #{tpu_custom_call.1} parent=5 // pred_fallthru
        _
      %p530 = scmp.le.s32.totalorder 2, %s18
      // Predicated region
      $region65: #{tpu_custom_call.1} parent=5 // pred_check
        %p531 = pneg %p530
      $region66: #{tpu_custom_call.1} parent=5 // pred_check_branch
        %533 = sbr.rel (%p531) target = $region68
      $region67: #{tpu_custom_call.1} parent=5 // pred_region
        %s534 = ssub.s32 %s18, 2
        // Predicated region
        $region69: #{tpu_custom_call.1} parent=67 // pred_check
          %p535 = pneg %p184
        $region70: #{tpu_custom_call.1} parent=67 // pred_check_branch
          %537 = sbr.rel (%p535) target = $region72
        $region71: #{tpu_custom_call.1} parent=67 // pred_region
          %s538 = sand.u32 %s169, 1
          %s539 = scalar_lea.sflag [#allocation4], %s538
          %s540 = sand.u32 %s169, 1
          %s541 = smul.addr %s540, 8
          %s542 = scalar_lea.vmem [#allocation8], %s541
          %543 = dma.done %s539, 128
        $region72: #{tpu_custom_call.1} parent=67 // pred_fallthru
          _
      $region68: #{tpu_custom_call.1} parent=5 // pred_fallthru
        _
    $region6: #{tpu_custom_call.1} parent=1 // loop_footer
      %s22 = sadd.s32 1, %s18
    $region7: #{tpu_custom_call.1} parent=1 // loop_footer_branch
      %17 = sbr.rel target = $region3
    $region8: #{tpu_custom_call.1} parent=1 // loop_exit
      _
    %544 = vsyncpa [#allocation3], 1
    %s545 = scalar_lea.sflag [#allocation3], 1
    %546 = vsyncpa %s545, 1
    %547 = vsyncpa [#allocation6], 1
    %548 = vsyncpa [#allocation4], 1
    %s549 = scalar_lea.sflag [#allocation4], 1
    %550 = vsyncpa %s549, 1

</llo_original>
